<compile_context>
chip_gen: v5e
topology: v5e:2x2
jax: 0.10.0
libtpu: 0.0.40
codegen_flags: <defaults>
</compile_context>

<pallas_src>
import functools

import jax
import jax.numpy as jnp
from jax.experimental import pallas as pl
from jax.experimental.pallas import tpu as pltpu


def _round_up(x: int, m: int) -> int:
    return (x + m - 1) // m * m


def _head_kernel(x_ref, w1_ref, b1_ref, w2_ref, b2_ref, o_ref, *, activation):
    # x_ref:  [TB, D_in]                      (batch tile, native dtype)
    # w1_ref: [D_in, D_inner]  b1_ref: [1, D_inner]
    # w2_ref: [D_inner, C_pad] b2_ref: [1, C_pad]
    # o_ref:  [TB, C_pad]
    # dense: x @ W1 + b1  -- native-dtype operands on the MXU, f32 accumulate.
    h = jnp.dot(x_ref[...], w1_ref[...], preferred_element_type=jnp.float32)
    h = h + b1_ref[...].astype(jnp.float32)
    if activation == "tanh":          # EUP (separate bundle slot)
        h = jnp.tanh(h)
    elif activation == "relu":
        h = jnp.maximum(h, 0.0)
    elif activation == "gelu":
        h = jax.nn.gelu(h)
    elif activation != "linear":
        raise ValueError(f"unsupported activation: {activation}")
    # out_proj: h @ W2 + b2  (cast the activation to the weight dtype so a
    # bf16 W2 keeps the second matmul a native bf16 MXU op).
    out = jnp.dot(h.astype(w2_ref.dtype), w2_ref[...],
                  preferred_element_type=jnp.float32)
    out = out + b2_ref[...].astype(jnp.float32)
    o_ref[...] = out.astype(o_ref.dtype)
    # dropout(p=0.0) is the identity (inference); nothing to emit.
    # TODO(synk): training-mode dropout (p>0) + custom VJP are intentionally
    # not implemented (module is used with pooler_dropout=0.0 at inference).


def _make_in_specs(tb, d_in, d_inner, c_pad, single_buffer_weights):
    wkw = ({"pipeline_mode": pl.Buffered(buffer_count=1)}
           if single_buffer_weights else {})
    return [
        pl.BlockSpec((tb, d_in), lambda i: (i, 0)),               # x tile
        pl.BlockSpec((d_in, d_inner), lambda i: (0, 0), **wkw),   # W1 (resident)
        pl.BlockSpec((1, d_inner), lambda i: (0, 0), **wkw),      # b1
        pl.BlockSpec((d_inner, c_pad), lambda i: (0, 0), **wkw),  # W2 (resident)
        pl.BlockSpec((1, c_pad), lambda i: (0, 0), **wkw),        # b2
    ]


@functools.partial(
    jax.jit,
    static_argnames=("tile_b", "activation", "single_buffer_weights"))
def _classification_head_impl(features, w1, b1, w2, b2, *, tile_b, activation,
                              single_buffer_weights):
    B, d_in = features.shape
    d_inner = w1.shape[1]
    n_cls = w2.shape[1]
    out_dtype = features.dtype

    # ---- lane-dense output: pad num_classes up to a multiple of 128 --------
    c_pad = _round_up(n_cls, 128)
    if c_pad != n_cls:
        w2 = jnp.pad(w2, ((0, 0), (0, c_pad - n_cls)))
        b2 = jnp.pad(b2, (0, c_pad - n_cls))
    b1_2d = b1.reshape(1, d_inner)
    b2_2d = b2.reshape(1, c_pad)

    # ---- batch tiling: big sublane-aligned tile, ragged last block masked --
    sub = 16 if features.dtype == jnp.bfloat16 else 8
    tb = max(sub, min(_round_up(tile_b, sub), _round_up(B, sub)))
    grid_n = pl.cdiv(B, tb)
    # v7x megacore: prefer an even grid length so both TensorCores get work.
    if grid_n > 1 and grid_n % 2 == 1 and tb % (2 * sub) == 0:
        tb //= 2
        grid_n = pl.cdiv(B, tb)
    grid = (grid_n,)
    b_eff = grid_n * tb  # rows actually processed (partial block incl.)

    # ---- VMEM budget + scheduler cost hint ----------------------------------
    w_bytes = (w1.size * w1.dtype.itemsize + w2.size * w2.dtype.itemsize
               + b1_2d.size * b1_2d.dtype.itemsize
               + b2_2d.size * b2_2d.dtype.itemsize)
    w_bufs = 1 if single_buffer_weights else 2
    io_bytes = 2 * tb * (d_in * features.dtype.itemsize
                         + c_pad * jnp.dtype(out_dtype).itemsize)
    scratch_bytes = 4 * tb * (d_inner + c_pad)      # f32 intermediates
    vmem_limit = int(min(max(w_bufs * w_bytes + io_bytes + scratch_bytes
                             + (4 << 20), 32 << 20), 64 << 20))
    # TODO(synk): for very large input_dim (resident W1 > ~32 MiB) add a K
    # grid axis over d_in with an f32 accumulator scratch + pl.when
    # init/finalize instead of keeping W1 fully resident (v7x 64 MiB VMEM).
    cost = pl.CostEstimate(
        flops=2 * b_eff * (d_in * d_inner + d_inner * c_pad),
        transcendentals=b_eff * d_inner,
        bytes_accessed=int(features.size * features.dtype.itemsize + w_bytes
                           + B * c_pad * jnp.dtype(out_dtype).itemsize),
    )

    out = pl.pallas_call(
        functools.partial(_head_kernel, activation=activation),
        out_shape=jax.ShapeDtypeStruct((B, c_pad), out_dtype),
        grid_spec=pltpu.PrefetchScalarGridSpec(
            num_scalar_prefetch=0,
            grid=grid,
            in_specs=_make_in_specs(tb, d_in, d_inner, c_pad,
                                    single_buffer_weights),
            out_specs=pl.BlockSpec((tb, c_pad), lambda i: (i, 0)),
        ),
        compiler_params=pltpu.CompilerParams(
            dimension_semantics=("parallel",),
            vmem_limit_bytes=vmem_limit),
        cost_estimate=cost,
    )(features, w1, b1_2d, w2, b2_2d)

    return out[:, :n_cls]


_SINGLE_BUFFER_OK = True  # flipped off if this JAX build rejects pl.Buffered(1)


def classification_head(features, w1, b1, w2, b2, *, tile_b=512,
                        activation="tanh"):
    """features: [B, input_dim]; w1: [input_dim, inner_dim]; b1: [inner_dim];
    w2: [inner_dim, num_classes]; b2: [num_classes] -> [B, num_classes]."""
    global _SINGLE_BUFFER_OK
    if _SINGLE_BUFFER_OK:
        try:
            return _classification_head_impl(
                features, w1, b1, w2, b2, tile_b=tile_b, activation=activation,
                single_buffer_weights=True)
        except Exception:
            # Fallback for JAX builds without single-buffer pipeline_mode
            # support: default double-buffered resident weights.
            _SINGLE_BUFFER_OK = False
    return _classification_head_impl(
        features, w1, b1, w2, b2, tile_b=tile_b, activation=activation,
        single_buffer_weights=False)


def init_params(key, input_dim, inner_dim, num_classes, dtype=jnp.float32):
    """Deterministic init mimicking nn.Linear (uniform +-1/sqrt(fan_in)).
    Weights are stored as [in, out] (transposed vs. PyTorch's [out, in])."""
    k1, k2, k3, k4 = jax.random.split(key, 4)
    lim1 = 1.0 / (input_dim ** 0.5)
    lim2 = 1.0 / (inner_dim ** 0.5)
    w1 = jax.random.uniform(k1, (input_dim, inner_dim), dtype, -lim1, lim1)
    b1 = jax.random.uniform(k2, (inner_dim,), dtype, -lim1, lim1)
    w2 = jax.random.uniform(k3, (inner_dim, num_classes), dtype, -lim2, lim2)
    b2 = jax.random.uniform(k4, (num_classes,), dtype, -lim2, lim2)
    return w1, b1, w2, b2


if __name__ == "__main__":
    key = jax.random.PRNGKey(0)
    input_dim, inner_dim, num_classes = 32, 32, 4
    kx, kp = jax.random.split(key)
    w1, b1, w2, b2 = init_params(kp, input_dim, inner_dim, num_classes)

    def ref_fn(x, w1, b1, w2, b2):
        return jnp.tanh(x.astype(jnp.float32) @ w1.astype(jnp.float32)
                        + b1.astype(jnp.float32)) @ w2.astype(jnp.float32) \
               + b2.astype(jnp.float32)

    # 1) ragged batch (exercises masked partial block + lane padding of classes)
    B = 6
    features = jax.random.normal(kx, (B, input_dim), jnp.float32)
    out = jax.block_until_ready(classification_head(features, w1, b1, w2, b2))
    ref = ref_fn(features, w1, b1, w2, b2)
    assert out.shape == (B, num_classes)
    assert jnp.allclose(out, ref, atol=1e-5, rtol=1e-5)

    # 2) multi-tile grid path (small tile_b to force several grid steps)
    B2 = 24
    feats2 = jax.random.normal(jax.random.PRNGKey(1), (B2, input_dim),
                               jnp.float32)
    out2 = jax.block_until_ready(
        classification_head(feats2, w1, b1, w2, b2, tile_b=8))
    ref2 = ref_fn(feats2, w1, b1, w2, b2)
    assert out2.shape == (B2, num_classes)
    assert jnp.allclose(out2, ref2, atol=1e-5, rtol=1e-5)

    # 3) ragged multi-tile (last block partially masked)
    B3 = 21
    feats3 = jax.random.normal(jax.random.PRNGKey(2), (B3, input_dim),
                               jnp.float32)
    out3 = jax.block_until_ready(
        classification_head(feats3, w1, b1, w2, b2, tile_b=8))
    ref3 = ref_fn(feats3, w1, b1, w2, b2)
    assert out3.shape == (B3, num_classes)
    assert jnp.allclose(out3, ref3, atol=1e-5, rtol=1e-5)

    # 4) bf16 operands fed straight to the MXU (f32 accumulation)
    fb = features.astype(jnp.bfloat16)
    w1b, b1b = w1.astype(jnp.bfloat16), b1.astype(jnp.bfloat16)
    w2b, b2b = w2.astype(jnp.bfloat16), b2.astype(jnp.bfloat16)
    out4 = jax.block_until_ready(classification_head(fb, w1b, b1b, w2b, b2b))
    ref4 = ref_fn(fb, w1b, b1b, w2b, b2b)
    assert out4.shape == (B, num_classes)
    assert jnp.allclose(out4.astype(jnp.float32), ref4, atol=0.05, rtol=0.05)

    print("KERNEL_OK")
</pallas_src>

<mosaic_0001>
module attributes {stable_mosaic.version = 11 : i64} {
  func.func @_head_kernel(%arg0: i32, %arg1: memref<8x32xf32, #tpu.memory_space<vmem>>, %arg2: memref<32x32xf32, #tpu.memory_space<vmem>>, %arg3: memref<1x32xf32, #tpu.memory_space<vmem>>, %arg4: memref<32x128xf32, #tpu.memory_space<vmem>>, %arg5: memref<1x128xf32, #tpu.memory_space<vmem>>, %arg6: memref<8x128xf32, #tpu.memory_space<vmem>>) attributes {dimension_semantics = [#tpu.dimension_semantics<parallel>], iteration_bounds = array<i64: 1>, scalar_prefetch = 0 : i64, scratch_operands = 0 : i64, tpu.core_type = #tpu.core_type<tc>, window_params = [{transform_indices = @transform_0, window_bounds = array<i64: 8, 32>}, {pipeline_mode = #tpu.pipeline_mode<synchronous>, transform_indices = @transform_1, window_bounds = array<i64: 32, 32>}, {pipeline_mode = #tpu.pipeline_mode<synchronous>, transform_indices = @transform_2, window_bounds = array<i64: 1, 32>}, {pipeline_mode = #tpu.pipeline_mode<synchronous>, transform_indices = @transform_3, window_bounds = array<i64: 32, 128>}, {pipeline_mode = #tpu.pipeline_mode<synchronous>, transform_indices = @transform_4, window_bounds = array<i64: 1, 128>}, {transform_indices = @transform_5, window_bounds = array<i64: 8, 128>}]} {
    %c0 = arith.constant 0 : index
    %c0_0 = arith.constant 0 : index
    %0 = vector.load %arg1[%c0, %c0_0] : memref<8x32xf32, #tpu.memory_space<vmem>>, vector<8x32xf32>
    %c0_1 = arith.constant 0 : index
    %c0_2 = arith.constant 0 : index
    %1 = vector.load %arg2[%c0_1, %c0_2] : memref<32x32xf32, #tpu.memory_space<vmem>>, vector<32x32xf32>
    %cst = arith.constant dense<0.000000e+00> : vector<8x32xf32>
    %2 = tpu.matmul %0, %1, %cst {dimension_numbers = #tpu.dot_dimension_numbers<[1], [0], [0], [1], [0, 0, 1, 1], [], []>} : vector<8x32xf32>, vector<32x32xf32>, vector<8x32xf32> -> vector<8x32xf32>
    %c0_3 = arith.constant 0 : index
    %c0_4 = arith.constant 0 : index
    %3 = vector.load %arg3[%c0_3, %c0_4] : memref<1x32xf32, #tpu.memory_space<vmem>>, vector<1x32xf32>
    %4 = vector.broadcast %3 : vector<1x32xf32> to vector<8x32xf32>
    %5 = arith.addf %2, %4 : vector<8x32xf32>
    %6 = math.tanh %5 : vector<8x32xf32>
    %c0_5 = arith.constant 0 : index
    %c0_6 = arith.constant 0 : index
    %7 = vector.load %arg4[%c0_5, %c0_6] : memref<32x128xf32, #tpu.memory_space<vmem>>, vector<32x128xf32>
    %cst_7 = arith.constant dense<0.000000e+00> : vector<8x128xf32>
    %8 = tpu.matmul %6, %7, %cst_7 {dimension_numbers = #tpu.dot_dimension_numbers<[1], [0], [0], [1], [0, 0, 1, 1], [], []>} : vector<8x32xf32>, vector<32x128xf32>, vector<8x128xf32> -> vector<8x128xf32>
    %c0_8 = arith.constant 0 : index
    %c0_9 = arith.constant 0 : index
    %9 = vector.load %arg5[%c0_8, %c0_9] : memref<1x128xf32, #tpu.memory_space<vmem>>, vector<1x128xf32>
    %10 = vector.broadcast %9 : vector<1x128xf32> to vector<8x128xf32>
    %11 = arith.addf %8, %10 : vector<8x128xf32>
    %c0_10 = arith.constant 0 : index
    %c0_11 = arith.constant 0 : index
    %12 = vector.load %arg6[%c0_10, %c0_11] : memref<8x128xf32, #tpu.memory_space<vmem>>, vector<8x128xf32>
    tpu.vector_store %arg6[%c0_10, %c0_11], %11 {strides = array<i32>} : memref<8x128xf32, #tpu.memory_space<vmem>>, vector<8x128xf32>,
    return
  }
  func.func @transform_0(%arg0: i32) -> (i32, i32) {
    %c0_i32 = arith.constant 0 : i32
    %c0_i32_0 = arith.constant 0 : i32
    return %arg0, %c0_i32 : i32, i32
  }
  func.func @transform_1(%arg0: i32) -> (i32, i32) {
    %c0_i32 = arith.constant 0 : i32
    %c0_i32_0 = arith.constant 0 : i32
    %c0_i32_1 = arith.constant 0 : i32
    return %c0_i32, %c0_i32_0 : i32, i32
  }
  func.func @transform_2(%arg0: i32) -> (i32, i32) {
    %c0_i32 = arith.constant 0 : i32
    %c0_i32_0 = arith.constant 0 : i32
    %c0_i32_1 = arith.constant 0 : i32
    return %c0_i32, %c0_i32_0 : i32, i32
  }
  func.func @transform_3(%arg0: i32) -> (i32, i32) {
    %c0_i32 = arith.constant 0 : i32
    %c0_i32_0 = arith.constant 0 : i32
    %c0_i32_1 = arith.constant 0 : i32
    return %c0_i32, %c0_i32_0 : i32, i32
  }
  func.func @transform_4(%arg0: i32) -> (i32, i32) {
    %c0_i32 = arith.constant 0 : i32
    %c0_i32_0 = arith.constant 0 : i32
    %c0_i32_1 = arith.constant 0 : i32
    return %c0_i32, %c0_i32_0 : i32, i32
  }
  func.func @transform_5(%arg0: i32) -> (i32, i32) {
    %c0_i32 = arith.constant 0 : i32
    %c0_i32_0 = arith.constant 0 : i32
    return %arg0, %c0_i32 : i32, i32
  }
}

module attributes {stable_mosaic.version = 11 : i64} {
  func.func @_head_kernel(%arg0: i32, %arg1: memref<8x32xf32, #tpu.memory_space<vmem>>, %arg2: memref<32x32xf32, #tpu.memory_space<vmem>>, %arg3: memref<1x32xf32, #tpu.memory_space<vmem>>, %arg4: memref<32x128xf32, #tpu.memory_space<vmem>>, %arg5: memref<1x128xf32, #tpu.memory_space<vmem>>, %arg6: memref<8x128xf32, #tpu.memory_space<vmem>>) attributes {dimension_semantics = [#tpu.dimension_semantics<parallel>], iteration_bounds = array<i64: 1>, scalar_prefetch = 0 : i64, scratch_operands = 0 : i64, tpu.core_type = #tpu.core_type<tc>, window_params = [{transform_indices = @transform_0, window_bounds = array<i64: 8, 32>}, {pipeline_mode = #tpu.pipeline_mode<synchronous>, transform_indices = @transform_1, window_bounds = array<i64: 32, 32>}, {pipeline_mode = #tpu.pipeline_mode<synchronous>, transform_indices = @transform_2, window_bounds = array<i64: 1, 32>}, {pipeline_mode = #tpu.pipeline_mode<synchronous>, transform_indices = @transform_3, window_bounds = array<i64: 32, 128>}, {pipeline_mode = #tpu.pipeline_mode<synchronous>, transform_indices = @transform_4, window_bounds = array<i64: 1, 128>}, {transform_indices = @transform_5, window_bounds = array<i64: 8, 128>}]} {
    %c0 = arith.constant 0 : index
    %c0_0 = arith.constant 0 : index
    %0 = vector.load %arg1[%c0, %c0_0] : memref<8x32xf32, #tpu.memory_space<vmem>>, vector<8x32xf32>
    %c0_1 = arith.constant 0 : index
    %c0_2 = arith.constant 0 : index
    %1 = vector.load %arg2[%c0_1, %c0_2] : memref<32x32xf32, #tpu.memory_space<vmem>>, vector<32x32xf32>
    %cst = arith.constant dense<0.000000e+00> : vector<8x32xf32>
    %2 = tpu.matmul %0, %1, %cst {dimension_numbers = #tpu.dot_dimension_numbers<[1], [0], [0], [1], [0, 0, 1, 1], [], []>} : vector<8x32xf32>, vector<32x32xf32>, vector<8x32xf32> -> vector<8x32xf32>
    %c0_3 = arith.constant 0 : index
    %c0_4 = arith.constant 0 : index
    %3 = vector.load %arg3[%c0_3, %c0_4] : memref<1x32xf32, #tpu.memory_space<vmem>>, vector<1x32xf32>
    %4 = vector.broadcast %3 : vector<1x32xf32> to vector<8x32xf32>
    %5 = arith.addf %2, %4 : vector<8x32xf32>
    %6 = math.tanh %5 : vector<8x32xf32>
    %c0_5 = arith.constant 0 : index
    %c0_6 = arith.constant 0 : index
    %7 = vector.load %arg4[%c0_5, %c0_6] : memref<32x128xf32, #tpu.memory_space<vmem>>, vector<32x128xf32>
    %cst_7 = arith.constant dense<0.000000e+00> : vector<8x128xf32>
    %8 = tpu.matmul %6, %7, %cst_7 {dimension_numbers = #tpu.dot_dimension_numbers<[1], [0], [0], [1], [0, 0, 1, 1], [], []>} : vector<8x32xf32>, vector<32x128xf32>, vector<8x128xf32> -> vector<8x128xf32>
    %c0_8 = arith.constant 0 : index
    %c0_9 = arith.constant 0 : index
    %9 = vector.load %arg5[%c0_8, %c0_9] : memref<1x128xf32, #tpu.memory_space<vmem>>, vector<1x128xf32>
    %10 = vector.broadcast %9 : vector<1x128xf32> to vector<8x128xf32>
    %11 = arith.addf %8, %10 : vector<8x128xf32>
    %c0_10 = arith.constant 0 : index
    %c0_11 = arith.constant 0 : index
    %12 = vector.load %arg6[%c0_10, %c0_11] : memref<8x128xf32, #tpu.memory_space<vmem>>, vector<8x128xf32>
    tpu.vector_store %arg6[%c0_10, %c0_11], %11 {strides = array<i32>} : memref<8x128xf32, #tpu.memory_space<vmem>>, vector<8x128xf32>,
    return
  }
  func.func @transform_0(%arg0: i32) -> (i32, i32) {
    %c0_i32 = arith.constant 0 : i32
    %c0_i32_0 = arith.constant 0 : i32
    return %arg0, %c0_i32 : i32, i32
  }
  func.func @transform_1(%arg0: i32) -> (i32, i32) {
    %c0_i32 = arith.constant 0 : i32
    %c0_i32_0 = arith.constant 0 : i32
    %c0_i32_1 = arith.constant 0 : i32
    return %c0_i32, %c0_i32_0 : i32, i32
  }
  func.func @transform_2(%arg0: i32) -> (i32, i32) {
    %c0_i32 = arith.constant 0 : i32
    %c0_i32_0 = arith.constant 0 : i32
    %c0_i32_1 = arith.constant 0 : i32
    return %c0_i32, %c0_i32_0 : i32, i32
  }
  func.func @transform_3(%arg0: i32) -> (i32, i32) {
    %c0_i32 = arith.constant 0 : i32
    %c0_i32_0 = arith.constant 0 : i32
    %c0_i32_1 = arith.constant 0 : i32
    return %c0_i32, %c0_i32_0 : i32, i32
  }
  func.func @transform_4(%arg0: i32) -> (i32, i32) {
    %c0_i32 = arith.constant 0 : i32
    %c0_i32_0 = arith.constant 0 : i32
    %c0_i32_1 = arith.constant 0 : i32
    return %c0_i32, %c0_i32_0 : i32, i32
  }
  func.func @transform_5(%arg0: i32) -> (i32, i32) {
    %c0_i32 = arith.constant 0 : i32
    %c0_i32_0 = arith.constant 0 : i32
    return %arg0, %c0_i32 : i32, i32
  }
}

</mosaic_0001>

<llo_original>
// kernel: _classification_head_impl.1
$region0: #{_classification_head_impl.1}
  #allocation0 [shape = 'u32[]', space=smem, size = 0x4, offset = 0x4, fixed_abs, tag = 'smem constant byte address 0x4 - core index']
  #allocation1 [shape = 'u32[72,128]{1,0:T(1,128)}', space=vmem, size = 0x9000, scoped, tag = 'internal scratch']
  %s0 = inlined_call_operand.vmem [shape: f32[6,32], index: 0, kind: input, shape index: {}]
  %s1 = inlined_call_operand.vmem [shape: f32[32,32], index: 1, kind: input, shape index: {}]
  %s2 = inlined_call_operand.vmem [shape: f32[1,32], index: 2, kind: input, shape index: {}]
  %s3 = inlined_call_operand.vmem [shape: f32[32,128], index: 3, kind: input, shape index: {}]
  %s4 = inlined_call_operand.vmem [shape: f32[1,128], index: 4, kind: input, shape index: {}]
  %s5 = inlined_call_operand.vmem [shape: f32[6,128], index: 5, kind: output, shape index: {}]
  %s6 = sld [smem:[#allocation0]]
  $region30: #{_classification_head_impl.1} parent=0
    _
  %s8 = ssub.s32 1, %s6
  %s9 = scalar_select 0, %s8, %s6
  // Predicated region
  $region2: #{_classification_head_impl.1} parent=0 // pred_check
    _
  $region3: #{_classification_head_impl.1} parent=0 // pred_check_branch
    %11 = sbr.rel (0) target = $region5
  $region4: #{_classification_head_impl.1} parent=0 // pred_region
    _
  $region5: #{_classification_head_impl.1} parent=0 // pred_fallthru
    _
  // Predicated region
  $region6: #{_classification_head_impl.1} parent=0 // pred_check
    _
  $region7: #{_classification_head_impl.1} parent=0 // pred_check_branch
    %13 = sbr.rel (0) target = $region9
  $region8: #{_classification_head_impl.1} parent=0 // pred_region
    _
  $region9: #{_classification_head_impl.1} parent=0 // pred_fallthru
    _
  // Predicated region
  $region10: #{_classification_head_impl.1} parent=0 // pred_check
    _
  $region11: #{_classification_head_impl.1} parent=0 // pred_check_branch
    %15 = sbr.rel (0) target = $region13
  $region12: #{_classification_head_impl.1} parent=0 // pred_region
    _
  $region13: #{_classification_head_impl.1} parent=0 // pred_fallthru
    _
  // Predicated region
  $region14: #{_classification_head_impl.1} parent=0 // pred_check
    _
  $region15: #{_classification_head_impl.1} parent=0 // pred_check_branch
    %17 = sbr.rel (0) target = $region17
  $region16: #{_classification_head_impl.1} parent=0 // pred_region
    _
  $region17: #{_classification_head_impl.1} parent=0 // pred_fallthru
    _
  // Predicated region
  $region18: #{_classification_head_impl.1} parent=0 // pred_check
    _
  $region19: #{_classification_head_impl.1} parent=0 // pred_check_branch
    %19 = sbr.rel (0) target = $region21
  $region20: #{_classification_head_impl.1} parent=0 // pred_region
    _
  $region21: #{_classification_head_impl.1} parent=0 // pred_fallthru
    _
  %v20 = vld [vmem:[%s0] sm:$0xff]
  %v21 = vld [vmem:[%s1] sm:$0xff]
  %v22 = vld [vmem:[%s1 + $0x8] sm:$0xff]
  %v23 = vld [vmem:[%s1 + $0x10] sm:$0xff]
  %v24 = vld [vmem:[%s1 + $0x18] sm:$0xff]
  %v25 = vld [vmem:[%s2] sm:$0x1]
  %v27 = vperm.slane %v25, 0
  %vm29 = vcmask 261120
  %v31 = vsel %vm29, %v20, 0
  %33 = vmatpush.msra.mxu0 0.0
  %34 = vmatpush.msra.mxu0 0.0
  %35 = vmatpush.msra.mxu0 0.0
  %36 = vmatpush.msra.mxu0 0.0
  %37 = vmatpush.msra.mxu0 0.0
  %38 = vmatpush.msra.mxu0 0.0
  %39 = vmatpush.msra.mxu0 0.0
  %40 = vmatpush.msra.mxu0 0.0
  %41 = vmatpush.msra.mxu0 0.0
  %42 = vmatpush.msra.mxu0 0.0
  %43 = vmatpush.msra.mxu0 0.0
  %44 = vmatpush.msra.mxu0 0.0
  %45 = vmatpush.msra.mxu0 %v24
  %46 = vmatpush.msra.mxu0 %v23
  %47 = vmatpush.msra.mxu0 %v22
  %48 = vmatpush.msra.mxu0 %v21
  %49 = vmatmul.f32.gmra.mxu0 %v31
  %v50 = vpop.f32.mrf.mxu0
  %v51 = vadd.f32 %v27, %v50
  %52 = vdwg.mxu0
  %v53 = vtanh.pop %v51
  %v54 = vld [vmem:[%s3] sm:$0xff]
  %v55 = vld [vmem:[%s3 + $0x8] sm:$0xff]
  %v56 = vld [vmem:[%s3 + $0x10] sm:$0xff]
  %v57 = vld [vmem:[%s3 + $0x18] sm:$0xff]
  %v58 = vld [vmem:[%s4] sm:$0x1]
  %v60 = vperm.slane %v58, 0
  %v63 = vsel %vm29, %v53, 0
  %65 = vmatpush.msra.mxu0 0.0
  %66 = vmatpush.msra.mxu0 0.0
  %67 = vmatpush.msra.mxu0 0.0
  %68 = vmatpush.msra.mxu0 0.0
  %69 = vmatpush.msra.mxu0 0.0
  %70 = vmatpush.msra.mxu0 0.0
  %71 = vmatpush.msra.mxu0 0.0
  %72 = vmatpush.msra.mxu0 0.0
  %73 = vmatpush.msra.mxu0 0.0
  %74 = vmatpush.msra.mxu0 0.0
  %75 = vmatpush.msra.mxu0 0.0
  %76 = vmatpush.msra.mxu0 0.0
  %77 = vmatpush.msra.mxu0 %v57
  %78 = vmatpush.msra.mxu0 %v56
  %79 = vmatpush.msra.mxu0 %v55
  %80 = vmatpush.msra.mxu0 %v54
  %81 = vmatmul.f32.gmra.mxu0 %v63
  %v82 = vpop.f32.mrf.mxu0
  %v83 = vadd.f32 %v60, %v82
  %84 = vdwg.mxu0
  %85 = vst [vmem:[%s5] sm:$0xff] %v83
  // Predicated region
  $region22: #{_classification_head_impl.1} parent=0 // pred_check
    _
  $region23: #{_classification_head_impl.1} parent=0 // pred_check_branch
    %87 = sbr.rel (0) target = $region25
  $region24: #{_classification_head_impl.1} parent=0 // pred_region
    _
  $region25: #{_classification_head_impl.1} parent=0 // pred_fallthru
    _
  // Predicated region
  $region26: #{_classification_head_impl.1} parent=0 // pred_check
    _
  $region27: #{_classification_head_impl.1} parent=0 // pred_check_branch
    %89 = sbr.rel (0) target = $region29
  $region28: #{_classification_head_impl.1} parent=0 // pred_region
    _
  $region29: #{_classification_head_impl.1} parent=0 // pred_fallthru
    _

// kernel: _classification_head_impl.1
$region0: #{_classification_head_impl.1}
  #allocation0 [shape = 'u32[]', space=smem, size = 0x4, offset = 0x4, fixed_abs, tag = 'smem constant byte address 0x4 - core index']
  #allocation1 [shape = 'u32[72,128]{1,0:T(1,128)}', space=vmem, size = 0x9000, scoped, tag = 'internal scratch']
  %s0 = inlined_call_operand.vmem [shape: f32[6,32], index: 0, kind: input, shape index: {}]
  %s1 = inlined_call_operand.vmem [shape: f32[32,32], index: 1, kind: input, shape index: {}]
  %s2 = inlined_call_operand.vmem [shape: f32[1,32], index: 2, kind: input, shape index: {}]
  %s3 = inlined_call_operand.vmem [shape: f32[32,128], index: 3, kind: input, shape index: {}]
  %s4 = inlined_call_operand.vmem [shape: f32[1,128], index: 4, kind: input, shape index: {}]
  %s5 = inlined_call_operand.vmem [shape: f32[6,128], index: 5, kind: output, shape index: {}]
  %s6 = sld [smem:[#allocation0]]
  $region30: #{_classification_head_impl.1} parent=0
    _
  %s8 = ssub.s32 1, %s6
  %s9 = scalar_select 0, %s8, %s6
  // Predicated region
  $region2: #{_classification_head_impl.1} parent=0 // pred_check
    _
  $region3: #{_classification_head_impl.1} parent=0 // pred_check_branch
    %11 = sbr.rel (0) target = $region5
  $region4: #{_classification_head_impl.1} parent=0 // pred_region
    _
  $region5: #{_classification_head_impl.1} parent=0 // pred_fallthru
    _
  // Predicated region
  $region6: #{_classification_head_impl.1} parent=0 // pred_check
    _
  $region7: #{_classification_head_impl.1} parent=0 // pred_check_branch
    %13 = sbr.rel (0) target = $region9
  $region8: #{_classification_head_impl.1} parent=0 // pred_region
    _
  $region9: #{_classification_head_impl.1} parent=0 // pred_fallthru
    _
  // Predicated region
  $region10: #{_classification_head_impl.1} parent=0 // pred_check
    _
  $region11: #{_classification_head_impl.1} parent=0 // pred_check_branch
    %15 = sbr.rel (0) target = $region13
  $region12: #{_classification_head_impl.1} parent=0 // pred_region
    _
  $region13: #{_classification_head_impl.1} parent=0 // pred_fallthru
    _
  // Predicated region
  $region14: #{_classification_head_impl.1} parent=0 // pred_check
    _
  $region15: #{_classification_head_impl.1} parent=0 // pred_check_branch
    %17 = sbr.rel (0) target = $region17
  $region16: #{_classification_head_impl.1} parent=0 // pred_region
    _
  $region17: #{_classification_head_impl.1} parent=0 // pred_fallthru
    _
  // Predicated region
  $region18: #{_classification_head_impl.1} parent=0 // pred_check
    _
  $region19: #{_classification_head_impl.1} parent=0 // pred_check_branch
    %19 = sbr.rel (0) target = $region21
  $region20: #{_classification_head_impl.1} parent=0 // pred_region
    _
  $region21: #{_classification_head_impl.1} parent=0 // pred_fallthru
    _
  %v20 = vld [vmem:[%s0] sm:$0xff]
  %v21 = vld [vmem:[%s1] sm:$0xff]
  %v22 = vld [vmem:[%s1 + $0x8] sm:$0xff]
  %v23 = vld [vmem:[%s1 + $0x10] sm:$0xff]
  %v24 = vld [vmem:[%s1 + $0x18] sm:$0xff]
  %v25 = vld [vmem:[%s2] sm:$0x1]
  %v27 = vperm.slane %v25, 0
  %vm29 = vcmask 261120
  %v31 = vsel %vm29, %v20, 0
  %33 = vmatpush.msra.mxu0 0.0
  %34 = vmatpush.msra.mxu0 0.0
  %35 = vmatpush.msra.mxu0 0.0
  %36 = vmatpush.msra.mxu0 0.0
  %37 = vmatpush.msra.mxu0 0.0
  %38 = vmatpush.msra.mxu0 0.0
  %39 = vmatpush.msra.mxu0 0.0
  %40 = vmatpush.msra.mxu0 0.0
  %41 = vmatpush.msra.mxu0 0.0
  %42 = vmatpush.msra.mxu0 0.0
  %43 = vmatpush.msra.mxu0 0.0
  %44 = vmatpush.msra.mxu0 0.0
  %45 = vmatpush.msra.mxu0 %v24
  %46 = vmatpush.msra.mxu0 %v23
  %47 = vmatpush.msra.mxu0 %v22
  %48 = vmatpush.msra.mxu0 %v21
  %49 = vmatmul.f32.gmra.mxu0 %v31
  %v50 = vpop.f32.mrf.mxu0
  %v51 = vadd.f32 %v27, %v50
  %52 = vdwg.mxu0
  %v53 = vtanh.pop %v51
  %v54 = vld [vmem:[%s3] sm:$0xff]
  %v55 = vld [vmem:[%s3 + $0x8] sm:$0xff]
  %v56 = vld [vmem:[%s3 + $0x10] sm:$0xff]
  %v57 = vld [vmem:[%s3 + $0x18] sm:$0xff]
  %v58 = vld [vmem:[%s4] sm:$0x1]
  %v60 = vperm.slane %v58, 0
  %v63 = vsel %vm29, %v53, 0
  %65 = vmatpush.msra.mxu0 0.0
  %66 = vmatpush.msra.mxu0 0.0
  %67 = vmatpush.msra.mxu0 0.0
  %68 = vmatpush.msra.mxu0 0.0
  %69 = vmatpush.msra.mxu0 0.0
  %70 = vmatpush.msra.mxu0 0.0
  %71 = vmatpush.msra.mxu0 0.0
  %72 = vmatpush.msra.mxu0 0.0
  %73 = vmatpush.msra.mxu0 0.0
  %74 = vmatpush.msra.mxu0 0.0
  %75 = vmatpush.msra.mxu0 0.0
  %76 = vmatpush.msra.mxu0 0.0
  %77 = vmatpush.msra.mxu0 %v57
  %78 = vmatpush.msra.mxu0 %v56
  %79 = vmatpush.msra.mxu0 %v55
  %80 = vmatpush.msra.mxu0 %v54
  %81 = vmatmul.f32.gmra.mxu0 %v63
  %v82 = vpop.f32.mrf.mxu0
  %v83 = vadd.f32 %v60, %v82
  %84 = vdwg.mxu0
  %85 = vst [vmem:[%s5] sm:$0xff] %v83
  // Predicated region
  $region22: #{_classification_head_impl.1} parent=0 // pred_check
    _
  $region23: #{_classification_head_impl.1} parent=0 // pred_check_branch
    %87 = sbr.rel (0) target = $region25
  $region24: #{_classification_head_impl.1} parent=0 // pred_region
    _
  $region25: #{_classification_head_impl.1} parent=0 // pred_fallthru
    _
  // Predicated region
  $region26: #{_classification_head_impl.1} parent=0 // pred_check
    _
  $region27: #{_classification_head_impl.1} parent=0 // pred_check_branch
    %89 = sbr.rel (0) target = $region29
  $region28: #{_classification_head_impl.1} parent=0 // pred_region
    _
  $region29: #{_classification_head_impl.1} parent=0 // pred_fallthru
    _

</llo_original>
